<compile_context>
chip_gen: v7x
topology: tpu7x:2x2x1
jax: 0.10.0
libtpu: 0.0.40
codegen_flags: <defaults>
</compile_context>

<pallas_src>
import functools

import jax
import jax.numpy as jnp
from jax.experimental import pallas as pl
from jax.experimental.pallas import tpu as pltpu

_LANE = 128
_SUBLANE = 8
_MAX_TILE_K = 2048      # max C_in tile (multiple of 128)
_MAX_TILE_CO = 512      # max C_out tile (multiple of 256 where possible)
_TILE_N_CANDIDATES = (1024, 768, 512, 384, 256, 192, 128, 96, 64, 32, 16, 8)


def _round_up(x, m):
    return (x + m - 1) // m * m


def _cdiv(a, b):
    return -(-a // b)


def _pick_divisor_tile(dim_p, max_tile, quantum=_LANE):
    """Largest multiple of `quantum` <= max_tile that exactly divides dim_p."""
    best, t = quantum, quantum
    while t <= min(dim_p, max_tile):
        if dim_p % t == 0:
            best = t
        t += quantum
    return best


def _pad_2d(arr, rows, cols):
    r, c = arr.shape
    if (r, c) == (rows, cols):
        return arr
    return jnp.zeros((rows, cols), arr.dtype).at[:r, :c].set(arr)


# ----------------------------------------------------------------------------
# Kernels
# ----------------------------------------------------------------------------
def _dense_block_kernel(x_ref, scale_ref, shift_ref, w_ref, b_ref, out_ref, *,
                        compute_dtype):
    # Folded BN affine -> ReLU -> (eval-mode Dropout == identity) -> Linear.
    h = jnp.maximum(x_ref[...] * scale_ref[...] + shift_ref[...], 0.0)
    out = jnp.dot(h.astype(compute_dtype), w_ref[...].astype(compute_dtype),
                  preferred_element_type=jnp.float32) + b_ref[...]
    out_ref[...] = out.astype(out_ref.dtype)


def _dense_block_kernel_acc(x_ref, scale_ref, shift_ref, w_ref, b_ref, out_ref,
                            acc_ref, *, compute_dtype):
    # K-blocked variant: accumulate partial products over C_in tiles.
    k = pl.program_id(2)

    @pl.when(k == 0)
    def _init():
        acc_ref[...] = jnp.zeros_like(acc_ref)

    h = jnp.maximum(x_ref[...] * scale_ref[...] + shift_ref[...], 0.0)
    acc_ref[...] += jnp.dot(h.astype(compute_dtype),
                            w_ref[...].astype(compute_dtype),
                            preferred_element_type=jnp.float32)

    @pl.when(k == pl.num_programs(2) - 1)
    def _finalize():
        out_ref[...] = (acc_ref[...] + b_ref[...]).astype(out_ref.dtype)


# ----------------------------------------------------------------------------
# Parameter preparation (do once; not per forward call)
# ----------------------------------------------------------------------------
def prepare_dense_block_params(gamma, beta, running_mean, running_var, weight,
                               bias, *, eps=1e-5):
    """Fold eval-mode BatchNorm into a per-channel affine and pad/transpose the
    Linear weight to lane-aligned shapes ONCE, outside the per-step loop."""
    C_out, C_in = weight.shape
    scale = (gamma.astype(jnp.float32)
             * jax.lax.rsqrt(running_var.astype(jnp.float32) + eps))
    shift = beta.astype(jnp.float32) - running_mean.astype(jnp.float32) * scale
    C_in_p = _round_up(C_in, _LANE)
    C_out_p = _round_up(C_out, _LANE)
    return {
        "scale": _pad_2d(scale.reshape(1, C_in), 1, C_in_p),
        "shift": _pad_2d(shift.reshape(1, C_in), 1, C_in_p),
        "w": _pad_2d(weight.T.astype(jnp.float32), C_in_p, C_out_p),
        "b": _pad_2d(bias.astype(jnp.float32).reshape(1, C_out), 1, C_out_p),
        "c_in": C_in,
        "c_out": C_out,
    }


# ----------------------------------------------------------------------------
# Forward
# ----------------------------------------------------------------------------
def _vmem_bytes(tn, tile_k, tile_co, n_k):
    # x / out double-buffered; W counted conservatively at 2 buffers; small
    # per-channel vectors; + f32 accumulator scratch when K is blocked.
    elems = (2 * tn * tile_k
             + 2 * tn * tile_co
             + 2 * tile_k * tile_co
             + (tn * tile_co if n_k > 1 else 0)
             + 2 * (2 * tile_k + tile_co))
    return 4 * elems


def _get_vmem_capacity():
    try:
        cap = int(pltpu.get_tpu_info().vmem_capacity_bytes)
        if cap > 0:
            return cap
    except Exception:
        pass
    return 64 * 1024 * 1024   # conservative fallback (v7x per-core VMEM)


def dense_block_forward(x, params, *, tile_n_max=1024, compute_dtype=jnp.float32):
    """Eval-mode DenseBlock forward: y = ReLU(x * scale + shift) @ W + b.

    x: (N, C_in) f32. params: output of prepare_dense_block_params.
    compute_dtype=jnp.bfloat16 roughly doubles MXU throughput on v6e/v7x and
    halves W VMEM bytes when accuracy allows; default f32 matches PyTorch.
    Returns (N, C_out) f32.
    """
    scale_p, shift_p = params["scale"], params["shift"]
    w_p, b_p = params["w"], params["b"]
    C_in, C_out = params["c_in"], params["c_out"]
    C_in_p, C_out_p = w_p.shape
    if x.dtype != jnp.float32:
        x = x.astype(jnp.float32)
    N = x.shape[0]
    assert x.shape[1] == C_in

    # ---- tile selection ----------------------------------------------------
    tile_k = _pick_divisor_tile(C_in_p, _MAX_TILE_K)
    tile_co = _pick_divisor_tile(C_out_p, _MAX_TILE_CO)
    n_k = C_in_p // tile_k
    n_j = C_out_p // tile_co

    vmem_cap = _get_vmem_capacity()
    budget = int(0.7 * vmem_cap)
    N8 = _round_up(N, _SUBLANE)
    tn = _SUBLANE
    for cand in _TILE_N_CANDIDATES:
        if cand > max(tile_n_max, _SUBLANE) or cand > max(N8, _SUBLANE):
            continue
        if _vmem_bytes(cand, tile_k, tile_co, n_k) <= budget:
            tn = cand
            break

    n_i = _cdiv(N8, tn)
    if n_i == 1 and N8 >= 256:
        n_i = 2                                   # give v7x's 2nd TC some rows
    tn = _round_up(_cdiv(N8, n_i), _SUBLANE)      # rebalance: <8 pad rows/tile
    N_pad = n_i * tn

    # ---- pad batch / channels only when actually needed ---------------------
    x_p = x if (N_pad, C_in_p) == (N, C_in) else _pad_2d(x, N_pad, C_in_p)

    est = _vmem_bytes(tn, tile_k, tile_co, n_k)
    vmem_limit = int(max(16 << 20, min(vmem_cap - (2 << 20), est + (16 << 20))))

    kernel_fn = _dense_block_kernel_acc if n_k > 1 else _dense_block_kernel
    kernel = functools.partial(kernel_fn, compute_dtype=compute_dtype)
    scratch_shapes = [pltpu.VMEM((tn, tile_co), jnp.float32)] if n_k > 1 else []

    cost = pl.CostEstimate(
        flops=2 * N_pad * C_in_p * C_out_p,
        transcendentals=0,
        bytes_accessed=4 * (N_pad * C_in_p * n_j + C_in_p * C_out_p
                            + N_pad * C_out_p),
    )

    def _build_and_call(single_buffer_resident):
        def spec(shape, index_map, resident):
            if resident and single_buffer_resident and hasattr(pl, "Buffered"):
                # Constant block index -> one buffer is enough; halves footprint.
                return pl.BlockSpec(shape, index_map,
                                    pipeline_mode=pl.Buffered(1))
            return pl.BlockSpec(shape, index_map)

        grid_spec = pltpu.PrefetchScalarGridSpec(
            num_scalar_prefetch=0,
            grid=(n_i, n_j, n_k),
            in_specs=[
                spec((tn, tile_k), lambda i, j, k: (i, k), resident=False),
                spec((1, tile_k), lambda i, j, k: (0, k), resident=(n_k == 1)),
                spec((1, tile_k), lambda i, j, k: (0, k), resident=(n_k == 1)),
                spec((tile_k, tile_co), lambda i, j, k: (k, j),
                     resident=(n_k == 1 and n_j == 1)),
                spec((1, tile_co), lambda i, j, k: (0, j), resident=(n_j == 1)),
            ],
            out_specs=pl.BlockSpec((tn, tile_co), lambda i, j, k: (i, j)),
            scratch_shapes=scratch_shapes,
        )
        return pl.pallas_call(
            kernel,
            out_shape=jax.ShapeDtypeStruct((N_pad, C_out_p), jnp.float32),
            grid_spec=grid_spec,
            compiler_params=pltpu.CompilerParams(
                dimension_semantics=("parallel", "parallel", "arbitrary"),
                vmem_limit_bytes=vmem_limit,
            ),
            cost_estimate=cost,
        )(x_p, scale_p, shift_p, w_p, b_p)

    try:
        out_p = _build_and_call(True)
    except Exception:
        # Fallback for Pallas builds that reject 1-deep pipeline_mode buffering.
        out_p = _build_and_call(False)

    if (N_pad, C_out_p) != (N, C_out):
        return out_p[:N, :C_out]
    return out_p


# ----------------------------------------------------------------------------
# Demo / self-check
# ----------------------------------------------------------------------------
if __name__ == "__main__":
    def reference(x, gamma, beta, mean, var, w, b, eps=1e-5):
        h = (x - mean) * jax.lax.rsqrt(var + eps) * gamma + beta
        h = jnp.maximum(h, 0.0)
        return h @ w.T + b

    def run_case(key, n, c_in, c_out):
        k_x, k_w, k_b, k_g, k_be, k_m, k_v = jax.random.split(key, 7)
        x = jax.random.normal(k_x, (n, c_in), jnp.float32)
        gamma = 1.0 + 0.1 * jax.random.normal(k_g, (c_in,), jnp.float32)
        beta = 0.1 * jax.random.normal(k_be, (c_in,), jnp.float32)
        mean = 0.1 * jax.random.normal(k_m, (c_in,), jnp.float32)
        var = jax.random.uniform(k_v, (c_in,), jnp.float32, 0.5, 1.5)
        bound = 1.0 / (c_in ** 0.5)
        w = jax.random.uniform(k_w, (c_out, c_in), jnp.float32, -bound, bound)
        b = jax.random.uniform(k_b, (c_out,), jnp.float32, -bound, bound)

        params = prepare_dense_block_params(gamma, beta, mean, var, w, b)
        out = jax.block_until_ready(dense_block_forward(x, params))
        ref = reference(x, gamma, beta, mean, var, w, b)
        assert out.shape == (n, c_out)
        assert jnp.allclose(out, ref, atol=1e-4, rtol=1e-4), "mismatch vs reference"
        return out

    key = jax.random.PRNGKey(0)
    k1, k2 = jax.random.split(key)
    # dropout_rate = 0.1 in the module -> identity in eval mode.
    run_case(k1, 8, 32, 16)     # module-scale example
    run_case(k2, 272, 40, 24)   # exercises batch tiling (2 tiles) + channel padding
    print("KERNEL_OK")
</pallas_src>

<mosaic_0001>
module attributes {stable_mosaic.version = 11 : i64} {
  func.func @_dense_block_kernel(%arg0: i32, %arg1: i32, %arg2: i32, %arg3: memref<8x128xf32, #tpu.memory_space<vmem>>, %arg4: memref<1x128xf32, #tpu.memory_space<vmem>>, %arg5: memref<1x128xf32, #tpu.memory_space<vmem>>, %arg6: memref<128x128xf32, #tpu.memory_space<vmem>>, %arg7: memref<1x128xf32, #tpu.memory_space<vmem>>, %arg8: memref<8x128xf32, #tpu.memory_space<vmem>>) attributes {dimension_semantics = [#tpu.dimension_semantics<parallel>, #tpu.dimension_semantics<parallel>, #tpu.dimension_semantics<arbitrary>], iteration_bounds = array<i64: 1, 1, 1>, scalar_prefetch = 0 : i64, scratch_operands = 0 : i64, tpu.core_type = #tpu.core_type<tc>, window_params = [{transform_indices = @transform_0, window_bounds = array<i64: 8, 128>}, {pipeline_mode = #tpu.pipeline_mode<synchronous>, transform_indices = @transform_1, window_bounds = array<i64: 1, 128>}, {pipeline_mode = #tpu.pipeline_mode<synchronous>, transform_indices = @transform_2, window_bounds = array<i64: 1, 128>}, {pipeline_mode = #tpu.pipeline_mode<synchronous>, transform_indices = @transform_3, window_bounds = array<i64: 128, 128>}, {pipeline_mode = #tpu.pipeline_mode<synchronous>, transform_indices = @transform_4, window_bounds = array<i64: 1, 128>}, {transform_indices = @transform_5, window_bounds = array<i64: 8, 128>}]} {
    %c0 = arith.constant 0 : index
    %c0_0 = arith.constant 0 : index
    %0 = vector.load %arg3[%c0, %c0_0] : memref<8x128xf32, #tpu.memory_space<vmem>>, vector<8x128xf32>
    %c0_1 = arith.constant 0 : index
    %c0_2 = arith.constant 0 : index
    %1 = vector.load %arg4[%c0_1, %c0_2] : memref<1x128xf32, #tpu.memory_space<vmem>>, vector<1x128xf32>
    %2 = vector.broadcast %1 : vector<1x128xf32> to vector<8x128xf32>
    %3 = arith.mulf %0, %2 : vector<8x128xf32>
    %c0_3 = arith.constant 0 : index
    %c0_4 = arith.constant 0 : index
    %4 = vector.load %arg5[%c0_3, %c0_4] : memref<1x128xf32, #tpu.memory_space<vmem>>, vector<1x128xf32>
    %5 = vector.broadcast %4 : vector<1x128xf32> to vector<8x128xf32>
    %6 = arith.addf %3, %5 : vector<8x128xf32>
    %cst = arith.constant 0.000000e+00 : f32
    %7 = vector.broadcast %cst : f32 to vector<8x128xf32>
    %8 = arith.maximumf %6, %7 : vector<8x128xf32>
    %c0_5 = arith.constant 0 : index
    %c0_6 = arith.constant 0 : index
    %9 = vector.load %arg6[%c0_5, %c0_6] : memref<128x128xf32, #tpu.memory_space<vmem>>, vector<128x128xf32>
    %cst_7 = arith.constant dense<0.000000e+00> : vector<8x128xf32>
    %10 = tpu.matmul %8, %9, %cst_7 {dimension_numbers = #tpu.dot_dimension_numbers<[1], [0], [0], [1], [0, 0, 1, 1], [], []>} : vector<8x128xf32>, vector<128x128xf32>, vector<8x128xf32> -> vector<8x128xf32>
    %c0_8 = arith.constant 0 : index
    %c0_9 = arith.constant 0 : index
    %11 = vector.load %arg7[%c0_8, %c0_9] : memref<1x128xf32, #tpu.memory_space<vmem>>, vector<1x128xf32>
    %12 = vector.broadcast %11 : vector<1x128xf32> to vector<8x128xf32>
    %13 = arith.addf %10, %12 : vector<8x128xf32>
    %c0_10 = arith.constant 0 : index
    %c0_11 = arith.constant 0 : index
    %14 = vector.load %arg8[%c0_10, %c0_11] : memref<8x128xf32, #tpu.memory_space<vmem>>, vector<8x128xf32>
    tpu.vector_store %arg8[%c0_10, %c0_11], %13 {strides = array<i32>} : memref<8x128xf32, #tpu.memory_space<vmem>>, vector<8x128xf32>,
    return
  }
  func.func @transform_0(%arg0: i32, %arg1: i32, %arg2: i32) -> (i32, i32) {
    %c0_i32 = arith.constant 0 : i32
    return %arg0, %arg2 : i32, i32
  }
  func.func @transform_1(%arg0: i32, %arg1: i32, %arg2: i32) -> (i32, i32) {
    %c0_i32 = arith.constant 0 : i32
    %c0_i32_0 = arith.constant 0 : i32
    return %c0_i32, %arg2 : i32, i32
  }
  func.func @transform_2(%arg0: i32, %arg1: i32, %arg2: i32) -> (i32, i32) {
    %c0_i32 = arith.constant 0 : i32
    %c0_i32_0 = arith.constant 0 : i32
    return %c0_i32, %arg2 : i32, i32
  }
  func.func @transform_3(%arg0: i32, %arg1: i32, %arg2: i32) -> (i32, i32) {
    %c0_i32 = arith.constant 0 : i32
    return %arg2, %arg1 : i32, i32
  }
  func.func @transform_4(%arg0: i32, %arg1: i32, %arg2: i32) -> (i32, i32) {
    %c0_i32 = arith.constant 0 : i32
    %c0_i32_0 = arith.constant 0 : i32
    return %c0_i32, %arg1 : i32, i32
  }
  func.func @transform_5(%arg0: i32, %arg1: i32, %arg2: i32) -> (i32, i32) {
    %c0_i32 = arith.constant 0 : i32
    return %arg0, %arg1 : i32, i32
  }
}

module attributes {stable_mosaic.version = 11 : i64} {
  func.func @_dense_block_kernel(%arg0: i32, %arg1: i32, %arg2: i32, %arg3: memref<8x128xf32, #tpu.memory_space<vmem>>, %arg4: memref<1x128xf32, #tpu.memory_space<vmem>>, %arg5: memref<1x128xf32, #tpu.memory_space<vmem>>, %arg6: memref<128x128xf32, #tpu.memory_space<vmem>>, %arg7: memref<1x128xf32, #tpu.memory_space<vmem>>, %arg8: memref<8x128xf32, #tpu.memory_space<vmem>>) attributes {dimension_semantics = [#tpu.dimension_semantics<parallel>, #tpu.dimension_semantics<parallel>, #tpu.dimension_semantics<arbitrary>], iteration_bounds = array<i64: 1, 1, 1>, scalar_prefetch = 0 : i64, scratch_operands = 0 : i64, tpu.core_type = #tpu.core_type<tc>, window_params = [{transform_indices = @transform_0, window_bounds = array<i64: 8, 128>}, {transform_indices = @transform_1, window_bounds = array<i64: 1, 128>}, {transform_indices = @transform_2, window_bounds = array<i64: 1, 128>}, {transform_indices = @transform_3, window_bounds = array<i64: 128, 128>}, {transform_indices = @transform_4, window_bounds = array<i64: 1, 128>}, {transform_indices = @transform_5, window_bounds = array<i64: 8, 128>}]} {
    %c0 = arith.constant 0 : index
    %c0_0 = arith.constant 0 : index
    %0 = vector.load %arg3[%c0, %c0_0] : memref<8x128xf32, #tpu.memory_space<vmem>>, vector<8x128xf32>
    %c0_1 = arith.constant 0 : index
    %c0_2 = arith.constant 0 : index
    %1 = vector.load %arg4[%c0_1, %c0_2] : memref<1x128xf32, #tpu.memory_space<vmem>>, vector<1x128xf32>
    %2 = vector.broadcast %1 : vector<1x128xf32> to vector<8x128xf32>
    %3 = arith.mulf %0, %2 : vector<8x128xf32>
    %c0_3 = arith.constant 0 : index
    %c0_4 = arith.constant 0 : index
    %4 = vector.load %arg5[%c0_3, %c0_4] : memref<1x128xf32, #tpu.memory_space<vmem>>, vector<1x128xf32>
    %5 = vector.broadcast %4 : vector<1x128xf32> to vector<8x128xf32>
    %6 = arith.addf %3, %5 : vector<8x128xf32>
    %cst = arith.constant 0.000000e+00 : f32
    %7 = vector.broadcast %cst : f32 to vector<8x128xf32>
    %8 = arith.maximumf %6, %7 : vector<8x128xf32>
    %c0_5 = arith.constant 0 : index
    %c0_6 = arith.constant 0 : index
    %9 = vector.load %arg6[%c0_5, %c0_6] : memref<128x128xf32, #tpu.memory_space<vmem>>, vector<128x128xf32>
    %cst_7 = arith.constant dense<0.000000e+00> : vector<8x128xf32>
    %10 = tpu.matmul %8, %9, %cst_7 {dimension_numbers = #tpu.dot_dimension_numbers<[1], [0], [0], [1], [0, 0, 1, 1], [], []>} : vector<8x128xf32>, vector<128x128xf32>, vector<8x128xf32> -> vector<8x128xf32>
    %c0_8 = arith.constant 0 : index
    %c0_9 = arith.constant 0 : index
    %11 = vector.load %arg7[%c0_8, %c0_9] : memref<1x128xf32, #tpu.memory_space<vmem>>, vector<1x128xf32>
    %12 = vector.broadcast %11 : vector<1x128xf32> to vector<8x128xf32>
    %13 = arith.addf %10, %12 : vector<8x128xf32>
    %c0_10 = arith.constant 0 : index
    %c0_11 = arith.constant 0 : index
    %14 = vector.load %arg8[%c0_10, %c0_11] : memref<8x128xf32, #tpu.memory_space<vmem>>, vector<8x128xf32>
    tpu.vector_store %arg8[%c0_10, %c0_11], %13 {strides = array<i32>} : memref<8x128xf32, #tpu.memory_space<vmem>>, vector<8x128xf32>,
    return
  }
  func.func @transform_0(%arg0: i32, %arg1: i32, %arg2: i32) -> (i32, i32) {
    %c0_i32 = arith.constant 0 : i32
    return %arg0, %arg2 : i32, i32
  }
  func.func @transform_1(%arg0: i32, %arg1: i32, %arg2: i32) -> (i32, i32) {
    %c0_i32 = arith.constant 0 : i32
    %c0_i32_0 = arith.constant 0 : i32
    return %c0_i32, %arg2 : i32, i32
  }
  func.func @transform_2(%arg0: i32, %arg1: i32, %arg2: i32) -> (i32, i32) {
    %c0_i32 = arith.constant 0 : i32
    %c0_i32_0 = arith.constant 0 : i32
    return %c0_i32, %arg2 : i32, i32
  }
  func.func @transform_3(%arg0: i32, %arg1: i32, %arg2: i32) -> (i32, i32) {
    %c0_i32 = arith.constant 0 : i32
    return %arg2, %arg1 : i32, i32
  }
  func.func @transform_4(%arg0: i32, %arg1: i32, %arg2: i32) -> (i32, i32) {
    %c0_i32 = arith.constant 0 : i32
    %c0_i32_0 = arith.constant 0 : i32
    return %c0_i32, %arg1 : i32, i32
  }
  func.func @transform_5(%arg0: i32, %arg1: i32, %arg2: i32) -> (i32, i32) {
    %c0_i32 = arith.constant 0 : i32
    return %arg0, %arg1 : i32, i32
  }
}

</mosaic_0001>

<llo_original>
// kernel: tpu_custom_call.1
$region0: #{tpu_custom_call.1}
  #allocation0 [shape = 'u32[]', space=smem, size = 0x4, offset = 0x4, fixed_abs, tag = 'smem constant byte address 0x4 - core index']
  #allocation1 [shape = 'u32[144,128]{1,0:T(1,128)}', space=vmem, size = 0x12000, scoped, tag = 'internal scratch']
  %s0 = inlined_call_operand.hbm [shape: f32[8,128], index: 0, kind: input, shape index: {}]
  %s1 = inlined_call_operand.vmem [shape: f32[1,128], index: 1, kind: input, shape index: {}]
  %s2 = inlined_call_operand.vmem [shape: f32[1,128], index: 2, kind: input, shape index: {}]
  %s3 = inlined_call_operand.hbm [shape: f32[128,128], index: 3, kind: input, shape index: {}]
  %s4 = inlined_call_operand.vmem [shape: f32[1,128], index: 4, kind: input, shape index: {}]
  %s5 = inlined_call_operand.hbm [shape: f32[8,128], index: 5, kind: output, shape index: {}]
  %s6 = sld [smem:[#allocation0]]
  $region38: #{tpu_custom_call.1} parent=0
    _
  %s8 = ssub.s32 1, %s6
  %s9 = scalar_select 0, %s8, %s6
  $region1: #{tpu_custom_call.1} parent=0
    #allocation2 [shape = 'u8[4096]{0}', space=vmem, size = 0x1000, scoped, tag = 'input window, operand 0, single buffered']
    #allocation3 [shape = 's32[1]{0}', space=sflag, size = 0x4, scoped, tag = 'scoped memory for tpu_custom_call.1']
    #allocation4 [shape = 's32[1]{0}', space=sflag, size = 0x4, scoped, tag = 'scoped memory for tpu_custom_call.1']
    #allocation5 [shape = 'u8[65536]{0}', space=vmem, size = 0x10000, scoped, tag = 'input window, operand 3, single buffered']
    #allocation6 [shape = 's32[1]{0}', space=sflag, size = 0x4, scoped, tag = 'scoped memory for tpu_custom_call.1']
    #allocation7 [shape = 'u8[4096]{0}', space=vmem, size = 0x1000, scoped, tag = 'output window, operand 0, single buffered']
    %10 = vsyncpa [#allocation3], 0
    %11 = vsyncpa [#allocation6], 0
    %12 = vsyncpa [#allocation4], 0
    // Predicated region
    $region2: #{tpu_custom_call.1} parent=1 // pred_check
      _
    $region3: #{tpu_custom_call.1} parent=1 // pred_check_branch
      %14 = sbr.rel (0) target = $region5
    $region4: #{tpu_custom_call.1} parent=1 // pred_region
      %s16 = ssub.s32 128, 128
      %17 = vsyncadd [#allocation3], %s16
      %s19 = sshll.u32 [#allocation2], 4
      %s20 = int_to_ptr.vmem [resolvable:$true] %s19
      %22 = dma.hbm_to_vmem [thread:$0]  %s0, 128, %s20, [#allocation3]
    $region5: #{tpu_custom_call.1} parent=1 // pred_fallthru
      _
    // Predicated region
    $region6: #{tpu_custom_call.1} parent=1 // pred_check
      _
    $region7: #{tpu_custom_call.1} parent=1 // pred_check_branch
      %24 = sbr.rel (0) target = $region9
    $region8: #{tpu_custom_call.1} parent=1 // pred_region
      _
    $region9: #{tpu_custom_call.1} parent=1 // pred_fallthru
      _
    // Predicated region
    $region10: #{tpu_custom_call.1} parent=1 // pred_check
      _
    $region11: #{tpu_custom_call.1} parent=1 // pred_check_branch
      %26 = sbr.rel (0) target = $region13
    $region12: #{tpu_custom_call.1} parent=1 // pred_region
      _
    $region13: #{tpu_custom_call.1} parent=1 // pred_fallthru
      _
    // Predicated region
    $region14: #{tpu_custom_call.1} parent=1 // pred_check
      _
    $region15: #{tpu_custom_call.1} parent=1 // pred_check_branch
      %28 = sbr.rel (0) target = $region17
    $region16: #{tpu_custom_call.1} parent=1 // pred_region
      %s30 = ssub.s32 2048, 2048
      %31 = vsyncadd [#allocation6], %s30
      %s32 = sshll.u32 [#allocation5], 4
      %s33 = int_to_ptr.vmem [resolvable:$true] %s32
      %38 = dma.hbm_to_vmem [thread:$0]  %s3, 2048, %s33, [#allocation6], 128, 128, 8
    $region17: #{tpu_custom_call.1} parent=1 // pred_fallthru
      _
    // Predicated region
    $region18: #{tpu_custom_call.1} parent=1 // pred_check
      _
    $region19: #{tpu_custom_call.1} parent=1 // pred_check_branch
      %40 = sbr.rel (0) target = $region21
    $region20: #{tpu_custom_call.1} parent=1 // pred_region
      _
    $region21: #{tpu_custom_call.1} parent=1 // pred_fallthru
      _
    // Predicated region
    $region22: #{tpu_custom_call.1} parent=1 // pred_check
      _
    $region23: #{tpu_custom_call.1} parent=1 // pred_check_branch
      %42 = sbr.rel (0) target = $region25
    $region24: #{tpu_custom_call.1} parent=1 // pred_region
      %43 = dma.done [#allocation3], 128
    $region25: #{tpu_custom_call.1} parent=1 // pred_fallthru
      _
    // Predicated region
    $region26: #{tpu_custom_call.1} parent=1 // pred_check
      _
    $region27: #{tpu_custom_call.1} parent=1 // pred_check_branch
      %45 = sbr.rel (0) target = $region29
    $region28: #{tpu_custom_call.1} parent=1 // pred_region
      %46 = dma.done [#allocation6], 2048
    $region29: #{tpu_custom_call.1} parent=1 // pred_fallthru
      _
    %v47 = vld [vmem:[#allocation2] sm:$0xff]
    %v48 = vld [vmem:[%s1] sm:$0x1]
    %v50 = vlaneseq
    %v51 = vshrl.u32 %v50, 7
    %v52 = vsub.s32 0, %v51
    %v53 = vrot.slane %v48, %v52
    %v55 = vmul.f32 %v47, %v53
    %v56 = vld [vmem:[%s2] sm:$0x1]
    %v58 = vlaneseq
    %v59 = vshrl.u32 %v58, 7
    %v60 = vsub.s32 0, %v59
    %v61 = vrot.slane %v56, %v60
    %v63 = vadd.f32 %v55, %v61
    %v64 = vmax.f32 %v63, 0.0
    %v65 = vld [vmem:[#allocation5] sm:$0xff]
    %v66 = vld [vmem:[#allocation5 + $0x8] sm:$0xff]
    %v67 = vld [vmem:[#allocation5 + $0x10] sm:$0xff]
    %v68 = vld [vmem:[#allocation5 + $0x18] sm:$0xff]
    %v69 = vld [vmem:[#allocation5 + $0x20] sm:$0xff]
    %v70 = vld [vmem:[#allocation5 + $0x28] sm:$0xff]
    %v71 = vld [vmem:[#allocation5 + $0x30] sm:$0xff]
    %v72 = vld [vmem:[#allocation5 + $0x38] sm:$0xff]
    %v73 = vld [vmem:[#allocation5 + $0x40] sm:$0xff]
    %v74 = vld [vmem:[#allocation5 + $0x48] sm:$0xff]
    %v75 = vld [vmem:[#allocation5 + $0x50] sm:$0xff]
    %v76 = vld [vmem:[#allocation5 + $0x58] sm:$0xff]
    %v77 = vld [vmem:[#allocation5 + $0x60] sm:$0xff]
    %v78 = vld [vmem:[#allocation5 + $0x68] sm:$0xff]
    %v79 = vld [vmem:[#allocation5 + $0x70] sm:$0xff]
    %v80 = vld [vmem:[#allocation5 + $0x78] sm:$0xff]
    %v81 = vld [vmem:[%s4] sm:$0x1]
    %v83 = vlaneseq
    %v84 = vshrl.u32 %v83, 7
    %v85 = vsub.s32 0, %v84
    %v86 = vrot.slane %v81, %v85
    %88 = vmatprep.subr.mxu0 0.0
    %89 = vmatpush1.msra.mxu0 %v65
    %90 = vmatprep.subr.mxu0 0.0
    %91 = vmatpush1.msra.mxu0 %v66
    %92 = vmatprep.subr.mxu0 0.0
    %93 = vmatpush1.msra.mxu0 %v67
    %94 = vmatprep.subr.mxu0 0.0
    %95 = vmatpush1.msra.mxu0 %v68
    %96 = vmatprep.subr.mxu0 0.0
    %97 = vmatpush1.msra.mxu0 %v69
    %98 = vmatprep.subr.mxu0 0.0
    %99 = vmatpush1.msra.mxu0 %v70
    %100 = vmatprep.subr.mxu0 0.0
    %101 = vmatpush1.msra.mxu0 %v71
    %102 = vmatprep.subr.mxu0 0.0
    %103 = vmatpush1.msra.mxu0 %v72
    %104 = vmatprep.subr.mxu0 0.0
    %105 = vmatpush1.msra.mxu0 %v73
    %106 = vmatprep.subr.mxu0 0.0
    %107 = vmatpush1.msra.mxu0 %v74
    %108 = vmatprep.subr.mxu0 0.0
    %109 = vmatpush1.msra.mxu0 %v75
    %110 = vmatprep.subr.mxu0 0.0
    %111 = vmatpush1.msra.mxu0 %v76
    %112 = vmatprep.subr.mxu0 0.0
    %113 = vmatpush1.msra.mxu0 %v77
    %114 = vmatprep.subr.mxu0 0.0
    %115 = vmatpush1.msra.mxu0 %v78
    %116 = vmatprep.subr.mxu0 0.0
    %117 = vmatpush1.msra.mxu0 %v79
    %118 = vmatprep.subr.mxu0 0.0
    %119 = vmatpush1.msra.mxu0 %v80
    %120 = vmatprep.subr.mxu0 0.0
    %121 = vmatpush1.msra.mxu0 0.0
    %122 = vmatprep.subr.mxu0 0.0
    %123 = vmatpush1.msra.mxu0 0.0
    %124 = vmatprep.subr.mxu0 0.0
    %125 = vmatpush1.msra.mxu0 0.0
    %126 = vmatprep.subr.mxu0 0.0
    %127 = vmatpush1.msra.mxu0 0.0
    %128 = vmatprep.subr.mxu0 0.0
    %129 = vmatpush1.msra.mxu0 0.0
    %130 = vmatprep.subr.mxu0 0.0
    %131 = vmatpush1.msra.mxu0 0.0
    %132 = vmatprep.subr.mxu0 0.0
    %133 = vmatpush1.msra.mxu0 0.0
    %134 = vmatprep.subr.mxu0 0.0
    %135 = vmatpush1.msra.mxu0 0.0
    %136 = vmatprep.subr.mxu0 0.0
    %137 = vmatpush1.msra.mxu0 0.0
    %138 = vmatprep.subr.mxu0 0.0
    %139 = vmatpush1.msra.mxu0 0.0
    %140 = vmatprep.subr.mxu0 0.0
    %141 = vmatpush1.msra.mxu0 0.0
    %142 = vmatprep.subr.mxu0 0.0
    %143 = vmatpush1.msra.mxu0 0.0
    %144 = vmatprep.subr.mxu0 0.0
    %145 = vmatpush1.msra.mxu0 0.0
    %146 = vmatprep.subr.mxu0 0.0
    %147 = vmatpush1.msra.mxu0 0.0
    %148 = vmatprep.subr.mxu0 0.0
    %149 = vmatpush1.msra.mxu0 0.0
    %150 = vmatprep.subr.mxu0 0.0
    %151 = vmatpush1.msra.mxu0 0.0
    %152 = vmatprep.mubr.f32.mxu0 0.0
    %153 = vmatmul.mubr.f32.gmra.mrb[0].mxu0 %v64
    %v154 = vpop.f32.mrb[0].mxu0
    %v155 = vadd.f32 %v86, %v154
    %v156 = vpop.f32.mrb[0].mxu0
    %157 = vdwg.mxu0
    %158 = vst [vmem:[#allocation7] sm:$0xff] %v155
    // Predicated region
    $region30: #{tpu_custom_call.1} parent=1 // pred_check
      _
    $region31: #{tpu_custom_call.1} parent=1 // pred_check_branch
      %160 = sbr.rel (0) target = $region33
    $region32: #{tpu_custom_call.1} parent=1 // pred_region
      %s162 = ssub.s32 128, 128
      %163 = vsyncadd [#allocation4], %s162
      %s165 = sshll.u32 [#allocation7], 4
      %s166 = int_to_ptr.vmem [resolvable:$true] %s165
      %168 = dma.vmem_to_hbm [thread:$0]  %s166, 128, %s5, [#allocation4]
    $region33: #{tpu_custom_call.1} parent=1 // pred_fallthru
      _
    // Predicated region
    $region34: #{tpu_custom_call.1} parent=1 // pred_check
      _
    $region35: #{tpu_custom_call.1} parent=1 // pred_check_branch
      %170 = sbr.rel (0) target = $region37
    $region36: #{tpu_custom_call.1} parent=1 // pred_region
      %171 = dma.done [#allocation4], 128
    $region37: #{tpu_custom_call.1} parent=1 // pred_fallthru
      _
    %172 = vsyncpa [#allocation3], 1
    %173 = vsyncpa [#allocation6], 1
    %174 = vsyncpa [#allocation4], 1

// kernel: tpu_custom_call.1
$region0: #{tpu_custom_call.1}
  #allocation0 [shape = 'u32[]', space=smem, size = 0x4, offset = 0x4, fixed_abs, tag = 'smem constant byte address 0x4 - core index']
  #allocation1 [shape = 'u32[144,128]{1,0:T(1,128)}', space=vmem, size = 0x12000, scoped, tag = 'internal scratch']
  %s0 = inlined_call_operand.hbm [shape: f32[8,128], index: 0, kind: input, shape index: {}]
  %s1 = inlined_call_operand.vmem [shape: f32[1,128], index: 1, kind: input, shape index: {}]
  %s2 = inlined_call_operand.vmem [shape: f32[1,128], index: 2, kind: input, shape index: {}]
  %s3 = inlined_call_operand.hbm [shape: f32[128,128], index: 3, kind: input, shape index: {}]
  %s4 = inlined_call_operand.vmem [shape: f32[1,128], index: 4, kind: input, shape index: {}]
  %s5 = inlined_call_operand.hbm [shape: f32[8,128], index: 5, kind: output, shape index: {}]
  %s6 = sld [smem:[#allocation0]]
  $region38: #{tpu_custom_call.1} parent=0
    _
  %s8 = ssub.s32 1, %s6
  %s9 = scalar_select 0, %s8, %s6
  $region1: #{tpu_custom_call.1} parent=0
    #allocation2 [shape = 'u8[4096]{0}', space=vmem, size = 0x1000, scoped, tag = 'input window, operand 0, single buffered']
    #allocation3 [shape = 's32[1]{0}', space=sflag, size = 0x4, scoped, tag = 'scoped memory for tpu_custom_call.1']
    #allocation4 [shape = 's32[1]{0}', space=sflag, size = 0x4, scoped, tag = 'scoped memory for tpu_custom_call.1']
    #allocation5 [shape = 'u8[65536]{0}', space=vmem, size = 0x10000, scoped, tag = 'input window, operand 3, single buffered']
    #allocation6 [shape = 's32[1]{0}', space=sflag, size = 0x4, scoped, tag = 'scoped memory for tpu_custom_call.1']
    #allocation7 [shape = 'u8[4096]{0}', space=vmem, size = 0x1000, scoped, tag = 'output window, operand 0, single buffered']
    %10 = vsyncpa [#allocation3], 0
    %11 = vsyncpa [#allocation6], 0
    %12 = vsyncpa [#allocation4], 0
    // Predicated region
    $region2: #{tpu_custom_call.1} parent=1 // pred_check
      _
    $region3: #{tpu_custom_call.1} parent=1 // pred_check_branch
      %14 = sbr.rel (0) target = $region5
    $region4: #{tpu_custom_call.1} parent=1 // pred_region
      %s16 = ssub.s32 128, 128
      %17 = vsyncadd [#allocation3], %s16
      %s19 = sshll.u32 [#allocation2], 4
      %s20 = int_to_ptr.vmem [resolvable:$true] %s19
      %22 = dma.hbm_to_vmem [thread:$0]  %s0, 128, %s20, [#allocation3]
    $region5: #{tpu_custom_call.1} parent=1 // pred_fallthru
      _
    // Predicated region
    $region6: #{tpu_custom_call.1} parent=1 // pred_check
      _
    $region7: #{tpu_custom_call.1} parent=1 // pred_check_branch
      %24 = sbr.rel (0) target = $region9
    $region8: #{tpu_custom_call.1} parent=1 // pred_region
      _
    $region9: #{tpu_custom_call.1} parent=1 // pred_fallthru
      _
    // Predicated region
    $region10: #{tpu_custom_call.1} parent=1 // pred_check
      _
    $region11: #{tpu_custom_call.1} parent=1 // pred_check_branch
      %26 = sbr.rel (0) target = $region13
    $region12: #{tpu_custom_call.1} parent=1 // pred_region
      _
    $region13: #{tpu_custom_call.1} parent=1 // pred_fallthru
      _
    // Predicated region
    $region14: #{tpu_custom_call.1} parent=1 // pred_check
      _
    $region15: #{tpu_custom_call.1} parent=1 // pred_check_branch
      %28 = sbr.rel (0) target = $region17
    $region16: #{tpu_custom_call.1} parent=1 // pred_region
      %s30 = ssub.s32 2048, 2048
      %31 = vsyncadd [#allocation6], %s30
      %s32 = sshll.u32 [#allocation5], 4
      %s33 = int_to_ptr.vmem [resolvable:$true] %s32
      %38 = dma.hbm_to_vmem [thread:$0]  %s3, 2048, %s33, [#allocation6], 128, 128, 8
    $region17: #{tpu_custom_call.1} parent=1 // pred_fallthru
      _
    // Predicated region
    $region18: #{tpu_custom_call.1} parent=1 // pred_check
      _
    $region19: #{tpu_custom_call.1} parent=1 // pred_check_branch
      %40 = sbr.rel (0) target = $region21
    $region20: #{tpu_custom_call.1} parent=1 // pred_region
      _
    $region21: #{tpu_custom_call.1} parent=1 // pred_fallthru
      _
    // Predicated region
    $region22: #{tpu_custom_call.1} parent=1 // pred_check
      _
    $region23: #{tpu_custom_call.1} parent=1 // pred_check_branch
      %42 = sbr.rel (0) target = $region25
    $region24: #{tpu_custom_call.1} parent=1 // pred_region
      %43 = dma.done [#allocation3], 128
    $region25: #{tpu_custom_call.1} parent=1 // pred_fallthru
      _
    // Predicated region
    $region26: #{tpu_custom_call.1} parent=1 // pred_check
      _
    $region27: #{tpu_custom_call.1} parent=1 // pred_check_branch
      %45 = sbr.rel (0) target = $region29
    $region28: #{tpu_custom_call.1} parent=1 // pred_region
      %46 = dma.done [#allocation6], 2048
    $region29: #{tpu_custom_call.1} parent=1 // pred_fallthru
      _
    %v47 = vld [vmem:[#allocation2] sm:$0xff]
    %v48 = vld [vmem:[%s1] sm:$0x1]
    %v50 = vlaneseq
    %v51 = vshrl.u32 %v50, 7
    %v52 = vsub.s32 0, %v51
    %v53 = vrot.slane %v48, %v52
    %v55 = vmul.f32 %v47, %v53
    %v56 = vld [vmem:[%s2] sm:$0x1]
    %v58 = vlaneseq
    %v59 = vshrl.u32 %v58, 7
    %v60 = vsub.s32 0, %v59
    %v61 = vrot.slane %v56, %v60
    %v63 = vadd.f32 %v55, %v61
    %v64 = vmax.f32 %v63, 0.0
    %v65 = vld [vmem:[#allocation5] sm:$0xff]
    %v66 = vld [vmem:[#allocation5 + $0x8] sm:$0xff]
    %v67 = vld [vmem:[#allocation5 + $0x10] sm:$0xff]
    %v68 = vld [vmem:[#allocation5 + $0x18] sm:$0xff]
    %v69 = vld [vmem:[#allocation5 + $0x20] sm:$0xff]
    %v70 = vld [vmem:[#allocation5 + $0x28] sm:$0xff]
    %v71 = vld [vmem:[#allocation5 + $0x30] sm:$0xff]
    %v72 = vld [vmem:[#allocation5 + $0x38] sm:$0xff]
    %v73 = vld [vmem:[#allocation5 + $0x40] sm:$0xff]
    %v74 = vld [vmem:[#allocation5 + $0x48] sm:$0xff]
    %v75 = vld [vmem:[#allocation5 + $0x50] sm:$0xff]
    %v76 = vld [vmem:[#allocation5 + $0x58] sm:$0xff]
    %v77 = vld [vmem:[#allocation5 + $0x60] sm:$0xff]
    %v78 = vld [vmem:[#allocation5 + $0x68] sm:$0xff]
    %v79 = vld [vmem:[#allocation5 + $0x70] sm:$0xff]
    %v80 = vld [vmem:[#allocation5 + $0x78] sm:$0xff]
    %v81 = vld [vmem:[%s4] sm:$0x1]
    %v83 = vlaneseq
    %v84 = vshrl.u32 %v83, 7
    %v85 = vsub.s32 0, %v84
    %v86 = vrot.slane %v81, %v85
    %88 = vmatprep.subr.mxu0 0.0
    %89 = vmatpush1.msra.mxu0 %v65
    %90 = vmatprep.subr.mxu0 0.0
    %91 = vmatpush1.msra.mxu0 %v66
    %92 = vmatprep.subr.mxu0 0.0
    %93 = vmatpush1.msra.mxu0 %v67
    %94 = vmatprep.subr.mxu0 0.0
    %95 = vmatpush1.msra.mxu0 %v68
    %96 = vmatprep.subr.mxu0 0.0
    %97 = vmatpush1.msra.mxu0 %v69
    %98 = vmatprep.subr.mxu0 0.0
    %99 = vmatpush1.msra.mxu0 %v70
    %100 = vmatprep.subr.mxu0 0.0
    %101 = vmatpush1.msra.mxu0 %v71
    %102 = vmatprep.subr.mxu0 0.0
    %103 = vmatpush1.msra.mxu0 %v72
    %104 = vmatprep.subr.mxu0 0.0
    %105 = vmatpush1.msra.mxu0 %v73
    %106 = vmatprep.subr.mxu0 0.0
    %107 = vmatpush1.msra.mxu0 %v74
    %108 = vmatprep.subr.mxu0 0.0
    %109 = vmatpush1.msra.mxu0 %v75
    %110 = vmatprep.subr.mxu0 0.0
    %111 = vmatpush1.msra.mxu0 %v76
    %112 = vmatprep.subr.mxu0 0.0
    %113 = vmatpush1.msra.mxu0 %v77
    %114 = vmatprep.subr.mxu0 0.0
    %115 = vmatpush1.msra.mxu0 %v78
    %116 = vmatprep.subr.mxu0 0.0
    %117 = vmatpush1.msra.mxu0 %v79
    %118 = vmatprep.subr.mxu0 0.0
    %119 = vmatpush1.msra.mxu0 %v80
    %120 = vmatprep.subr.mxu0 0.0
    %121 = vmatpush1.msra.mxu0 0.0
    %122 = vmatprep.subr.mxu0 0.0
    %123 = vmatpush1.msra.mxu0 0.0
    %124 = vmatprep.subr.mxu0 0.0
    %125 = vmatpush1.msra.mxu0 0.0
    %126 = vmatprep.subr.mxu0 0.0
    %127 = vmatpush1.msra.mxu0 0.0
    %128 = vmatprep.subr.mxu0 0.0
    %129 = vmatpush1.msra.mxu0 0.0
    %130 = vmatprep.subr.mxu0 0.0
    %131 = vmatpush1.msra.mxu0 0.0
    %132 = vmatprep.subr.mxu0 0.0
    %133 = vmatpush1.msra.mxu0 0.0
    %134 = vmatprep.subr.mxu0 0.0
    %135 = vmatpush1.msra.mxu0 0.0
    %136 = vmatprep.subr.mxu0 0.0
    %137 = vmatpush1.msra.mxu0 0.0
    %138 = vmatprep.subr.mxu0 0.0
    %139 = vmatpush1.msra.mxu0 0.0
    %140 = vmatprep.subr.mxu0 0.0
    %141 = vmatpush1.msra.mxu0 0.0
    %142 = vmatprep.subr.mxu0 0.0
    %143 = vmatpush1.msra.mxu0 0.0
    %144 = vmatprep.subr.mxu0 0.0
    %145 = vmatpush1.msra.mxu0 0.0
    %146 = vmatprep.subr.mxu0 0.0
    %147 = vmatpush1.msra.mxu0 0.0
    %148 = vmatprep.subr.mxu0 0.0
    %149 = vmatpush1.msra.mxu0 0.0
    %150 = vmatprep.subr.mxu0 0.0
    %151 = vmatpush1.msra.mxu0 0.0
    %152 = vmatprep.mubr.f32.mxu0 0.0
    %153 = vmatmul.mubr.f32.gmra.mrb[0].mxu0 %v64
    %v154 = vpop.f32.mrb[0].mxu0
    %v155 = vadd.f32 %v86, %v154
    %v156 = vpop.f32.mrb[0].mxu0
    %157 = vdwg.mxu0
    %158 = vst [vmem:[#allocation7] sm:$0xff] %v155
    // Predicated region
    $region30: #{tpu_custom_call.1} parent=1 // pred_check
      _
    $region31: #{tpu_custom_call.1} parent=1 // pred_check_branch
      %160 = sbr.rel (0) target = $region33
    $region32: #{tpu_custom_call.1} parent=1 // pred_region
      %s162 = ssub.s32 128, 128
      %163 = vsyncadd [#allocation4], %s162
      %s165 = sshll.u32 [#allocation7], 4
      %s166 = int_to_ptr.vmem [resolvable:$true] %s165
      %168 = dma.vmem_to_hbm [thread:$0]  %s166, 128, %s5, [#allocation4]
    $region33: #{tpu_custom_call.1} parent=1 // pred_fallthru
      _
    // Predicated region
    $region34: #{tpu_custom_call.1} parent=1 // pred_check
      _
    $region35: #{tpu_custom_call.1} parent=1 // pred_check_branch
      %170 = sbr.rel (0) target = $region37
    $region36: #{tpu_custom_call.1} parent=1 // pred_region
      %171 = dma.done [#allocation4], 128
    $region37: #{tpu_custom_call.1} parent=1 // pred_fallthru
      _
    %172 = vsyncpa [#allocation3], 1
    %173 = vsyncpa [#allocation6], 1
    %174 = vsyncpa [#allocation4], 1

</llo_original>
